<compile_context>
chip_gen: v7x
topology: tpu7x:2x2x1
jax: 0.10.0
libtpu: 0.0.40
codegen_flags: <defaults>
</compile_context>

<pallas_src>
import functools

import jax
import jax.numpy as jnp
from jax import lax
from jax.experimental import pallas as pl
from jax.experimental.pallas import tpu as pltpu


NEG_INF = -1e30
LEAKY_SLOPE = 0.2               # GATv2Conv default negative_slope
VMEM_LIMIT = 32 * 1024 * 1024   # safe scoped-VMEM limit on v5e/v6e/v7x


def _round_up(x, m):
    return ((x + m - 1) // m) * m


def _elu_f32(x):
    # expm1(min(x, 0)) avoids inf on the (masked-out) positive branch.
    return jnp.where(x > 0, x, jnp.expm1(jnp.minimum(x, 0.0)))


# ---------------------------------------------------------------------------
# Kernel 1: fused lin_l | lin_r projection   y = x @ [w_l | w_r] + [b_l | b_r]
# ---------------------------------------------------------------------------
def _fused_linear_kernel(x_ref, w_ref, b_ref, xl_ref, xr_ref, *, out_dim):
    y = jnp.dot(x_ref[...], w_ref[...], preferred_element_type=jnp.float32)
    y = y + b_ref[...]
    xl_ref[...] = y[:, :out_dim].astype(xl_ref.dtype)
    xr_ref[...] = y[:, out_dim:].astype(xr_ref.dtype)


def _fused_linear(x, w_lr, b_lr, *, out_dim, tile):
    n_pad, f = x.shape
    grid = (n_pad // tile,)
    kernel = functools.partial(_fused_linear_kernel, out_dim=out_dim)
    return pl.pallas_call(
        kernel,
        grid=grid,
        in_specs=[pl.BlockSpec((tile, f), lambda i: (i, 0)),        # x (bf16)
                  pl.BlockSpec(w_lr.shape, lambda i: (0, 0)),       # [w_l|w_r] bf16
                  pl.BlockSpec(b_lr.shape, lambda i: (0, 0))],      # [b_l|b_r] f32
        out_specs=(pl.BlockSpec((tile, out_dim), lambda i: (i, 0)),
                   pl.BlockSpec((tile, out_dim), lambda i: (i, 0))),
        out_shape=(jax.ShapeDtypeStruct((n_pad, out_dim), jnp.bfloat16),
                   jax.ShapeDtypeStruct((n_pad, out_dim), jnp.bfloat16)),
        compiler_params=pltpu.CompilerParams(
            dimension_semantics=("parallel",),
            vmem_limit_bytes=VMEM_LIMIT),
    )(x, w_lr, b_lr)


# ---------------------------------------------------------------------------
# Kernel 2: GATv2 attention + aggregation for one tile of target nodes.
# ---------------------------------------------------------------------------
def _attend(mask, xlT, xr, att_ref, head, out_ch, rhs):
    """One GATv2 head: bf16 lane-dense scores, masked softmax over sources,
    aggregation of `rhs` ([K, Np], contracted over Np)."""
    base = head * out_ch
    score = None
    for c in range(out_ch):                       # static unroll, C small
        col = base + c
        v = xr[:, col:col + 1] + xlT[col:col + 1, :]          # [Ti, Np] bf16
        term = att_ref[head, c].astype(jnp.bfloat16) * jnp.maximum(
            v, LEAKY_SLOPE * v)                               # 1-op leaky_relu
        score = term if score is None else score + term
    # Masked softmax in f32; forced self-loops keep every real row finite.
    score = jnp.where(mask, score.astype(jnp.float32), NEG_INF)
    score = score - jnp.max(score, axis=1, keepdims=True)
    p = jnp.exp(score)
    inv = pl.reciprocal(jnp.sum(p, axis=1, keepdims=True), approx=True)
    alpha = (p * inv).astype(jnp.bfloat16)
    # Contract over sources (Np) directly against the transposed x_l block.
    return lax.dot_general(alpha, rhs,
                           dimension_numbers=(((1,), (1,)), ((), ())),
                           preferred_element_type=jnp.float32)


def _gat_layer1_kernel(adj_ref, xlT_ref, xr_ref, att_ref, bias_ref, out_ref,
                       *, heads, out_ch):
    mask = adj_ref[...] > 0                        # [Ti, Np] int8 -> bool
    xlT = xlT_ref[...]                             # [H*C, Np] bf16
    xr = xr_ref[...]                               # [Ti, H*C] bf16
    bias = bias_ref[...]                           # [1, H*C] f32
    for h in range(heads):                         # static unroll (heads small)
        base = h * out_ch
        agg = _attend(mask, xlT, xr, att_ref, h, out_ch,
                      xlT[base:base + out_ch, :])
        head_out = _elu_f32(agg + bias[:, base:base + out_ch])
        out_ref[:, base:base + out_ch] = head_out.astype(out_ref.dtype)


def _gat_layer2_kernel(adj_ref, xlT_ref, xr_ref, att_ref, bias_ref,
                       h_ref, logp_ref, *, out_ch):
    mask = adj_ref[...] > 0
    xlT = xlT_ref[...]                             # [out_pad, Np] (pad cols = 0)
    xr = xr_ref[...]                               # [Ti, out_pad]
    h2 = _attend(mask, xlT, xr, att_ref, 0, out_ch, xlT) + bias_ref[...]
    # log_softmax over the real class lanes only (padded lanes masked out).
    lane = lax.broadcasted_iota(jnp.int32, h2.shape, 1)
    zm = jnp.where(lane < out_ch, h2, NEG_INF)
    m = jnp.max(zm, axis=1, keepdims=True)
    z = zm - m
    lse = jnp.log(jnp.sum(jnp.exp(z), axis=1, keepdims=True))
    h_ref[...] = h2
    logp_ref[...] = z - lse


def _attn_cost(n_pad, heads, out_ch, agg_width):
    n2 = n_pad * n_pad
    return pl.CostEstimate(
        flops=int(heads * n2 * (5 * out_ch + 6) + 2 * n2 * agg_width),
        transcendentals=int(heads * n2),
        bytes_accessed=int(n2 + 8 * n_pad * (heads * out_ch + agg_width)))


def _gat_layer1(adj, xlT, xr, att, bias, *, heads, out_ch, tile):
    n_pad = adj.shape[0]
    hc = heads * out_ch
    grid = (n_pad // tile,)
    kernel = functools.partial(_gat_layer1_kernel, heads=heads, out_ch=out_ch)
    return pl.pallas_call(
        kernel,
        grid=grid,
        in_specs=[
            pl.BlockSpec((tile, n_pad), lambda i: (i, 0)),        # adj tile int8
            pl.BlockSpec((hc, n_pad), lambda i: (0, 0)),          # x_l^T bf16
            pl.BlockSpec((tile, hc), lambda i: (i, 0)),           # x_r tile bf16
            pl.BlockSpec(memory_space=pltpu.MemorySpace.SMEM),    # att [H, C]
            pl.BlockSpec((1, hc), lambda i: (0, 0)),              # bias f32
        ],
        out_specs=pl.BlockSpec((tile, hc), lambda i: (i, 0)),
        out_shape=jax.ShapeDtypeStruct((n_pad, hc), jnp.bfloat16),
        compiler_params=pltpu.CompilerParams(
            dimension_semantics=("parallel",),
            vmem_limit_bytes=VMEM_LIMIT),
        cost_estimate=_attn_cost(n_pad, heads, out_ch, out_ch),
    )(adj, xlT, xr, att, bias)


def _gat_layer2(adj, xlT, xr, att, bias, *, out_ch, out_pad, tile):
    n_pad = adj.shape[0]
    grid = (n_pad // tile,)
    kernel = functools.partial(_gat_layer2_kernel, out_ch=out_ch)
    return pl.pallas_call(
        kernel,
        grid=grid,
        in_specs=[
            pl.BlockSpec((tile, n_pad), lambda i: (i, 0)),        # adj tile int8
            pl.BlockSpec((out_pad, n_pad), lambda i: (0, 0)),     # x_l^T bf16
            pl.BlockSpec((tile, out_pad), lambda i: (i, 0)),      # x_r tile bf16
            pl.BlockSpec(memory_space=pltpu.MemorySpace.SMEM),    # att [1, C]
            pl.BlockSpec((1, out_pad), lambda i: (0, 0)),         # bias f32 (padded)
        ],
        out_specs=(pl.BlockSpec((tile, out_pad), lambda i: (i, 0)),
                   pl.BlockSpec((tile, out_pad), lambda i: (i, 0))),
        out_shape=(jax.ShapeDtypeStruct((n_pad, out_pad), jnp.float32),
                   jax.ShapeDtypeStruct((n_pad, out_pad), jnp.float32)),
        compiler_params=pltpu.CompilerParams(
            dimension_semantics=("parallel",),
            vmem_limit_bytes=VMEM_LIMIT),
        cost_estimate=_attn_cost(n_pad, 1, out_ch, out_pad),
    )(adj, xlT, xr, att, bias)


# ---------------------------------------------------------------------------
# Host-side wrapper
# ---------------------------------------------------------------------------
def edge_index_to_adj(edge_index, n_pad):
    """adj[i, j] = 1 iff edge j -> i; self loops forced (add_self_loops=True).
    Stored as int8 (4x less HBM/DMA traffic than f32).
    Note: duplicate edges collapse to a single 1."""
    src = edge_index[0]
    dst = edge_index[1]
    adj = jnp.zeros((n_pad, n_pad), jnp.int8)
    adj = adj.at[dst, src].set(1)
    diag = jnp.arange(n_pad)
    adj = adj.at[diag, diag].set(1)
    return adj


def gat_forward(x, edge_index, params, *, heads1, dim_h, dim_out, tile=256):
    n, dim_in = x.shape
    tile = _round_up(min(tile, _round_up(n, 8)), 8)
    n_pad = _round_up(n, tile)
    hid = heads1 * dim_h
    out_pad = _round_up(dim_out, 128)

    x_p = jnp.zeros((n_pad, dim_in), jnp.bfloat16).at[:n, :].set(
        x.astype(jnp.bfloat16))
    adj = edge_index_to_adj(edge_index, n_pad)
    # TODO(synk): for large sparse graphs, replace the dense int8 adjacency and
    #             full-Np resident blocks with CSR + PrefetchScalarGridSpec gather
    #             and a source-chunk grid axis with online softmax (O(E) work,
    #             VMEM bounded independent of N).

    # layer 1: GATv2Conv(dim_in, dim_h, heads=heads1), concat heads, fused ELU
    w1 = jnp.concatenate([params["w1_l"], params["w1_r"]],
                         axis=1).astype(jnp.bfloat16)
    b1 = jnp.concatenate([params["b1_l"], params["b1_r"]], axis=1)
    xl1, xr1 = _fused_linear(x_p, w1, b1, out_dim=hid, tile=tile)
    h1 = _gat_layer1(adj, xl1.T, xr1, params["att1"], params["bias1"],
                     heads=heads1, out_ch=dim_h, tile=tile)

    # layer 2: GATv2Conv(hid, dim_out, heads=1) + log_softmax (lane-dense pad)
    pad_cols = out_pad - dim_out
    w2_l = jnp.pad(params["w2_l"], ((0, 0), (0, pad_cols)))
    w2_r = jnp.pad(params["w2_r"], ((0, 0), (0, pad_cols)))
    b2_l = jnp.pad(params["b2_l"], ((0, 0), (0, pad_cols)))
    b2_r = jnp.pad(params["b2_r"], ((0, 0), (0, pad_cols)))
    bias2 = jnp.pad(params["bias2"], ((0, 0), (0, pad_cols)))
    w2 = jnp.concatenate([w2_l, w2_r], axis=1).astype(jnp.bfloat16)
    b2 = jnp.concatenate([b2_l, b2_r], axis=1)
    xl2, xr2 = _fused_linear(h1, w2, b2, out_dim=out_pad, tile=tile)
    h_pad, logp_pad = _gat_layer2(adj, xl2.T, xr2, params["att2"], bias2,
                                  out_ch=dim_out, out_pad=out_pad, tile=tile)
    return h_pad[:n, :dim_out], logp_pad[:n, :dim_out]


def init_params(key, dim_in, dim_h, dim_out, heads):
    ks = jax.random.split(key, 10)
    s = 0.1
    hid = heads * dim_h
    return {
        # GATv2Conv #1: lin_l / lin_r  (in=dim_in, out=heads*dim_h, bias=True)
        "w1_l": s * jax.random.normal(ks[0], (dim_in, hid), jnp.float32),
        "b1_l": s * jax.random.normal(ks[1], (1, hid), jnp.float32),
        "w1_r": s * jax.random.normal(ks[2], (dim_in, hid), jnp.float32),
        "b1_r": s * jax.random.normal(ks[3], (1, hid), jnp.float32),
        "att1": s * jax.random.normal(ks[4], (heads, dim_h), jnp.float32),
        "bias1": s * jax.random.normal(ks[5], (1, hid), jnp.float32),
        # GATv2Conv #2: (in=heads*dim_h, out=dim_out, heads=1)
        "w2_l": s * jax.random.normal(ks[6], (hid, dim_out), jnp.float32),
        "b2_l": s * jax.random.normal(ks[7], (1, dim_out), jnp.float32),
        "w2_r": s * jax.random.normal(ks[8], (hid, dim_out), jnp.float32),
        "b2_r": s * jax.random.normal(ks[9], (1, dim_out), jnp.float32),
        "att2": s * jnp.ones((1, dim_out), jnp.float32),
        "bias2": s * jnp.ones((1, dim_out), jnp.float32),
    }


if __name__ == "__main__":
    # small, deterministic problem
    N = 8          # nodes
    DIM_IN = 16    # input feature dim
    DIM_H = 8      # hidden dim per head
    HEADS = 8      # heads in layer 1  -> hidden width 64
    DIM_OUT = 4    # classes

    key = jax.random.PRNGKey(0)
    kx, kp = jax.random.split(key)
    x = jax.random.normal(kx, (N, DIM_IN), jnp.float32)

    # deterministic ring graph (both directions): j -> i
    src = jnp.concatenate([jnp.arange(N), (jnp.arange(N) + 1) % N])
    dst = jnp.concatenate([(jnp.arange(N) + 1) % N, jnp.arange(N)])
    edge_index = jnp.stack([src, dst], axis=0).astype(jnp.int32)  # [2, 16]

    params = init_params(kp, DIM_IN, DIM_H, DIM_OUT, HEADS)

    h, logp = gat_forward(x, edge_index, params,
                          heads1=HEADS, dim_h=DIM_H, dim_out=DIM_OUT)
    jax.block_until_ready((h, logp))

    assert h.shape == (N, DIM_OUT) and logp.shape == (N, DIM_OUT)
    assert bool(jnp.all(jnp.isfinite(h))) and bool(jnp.all(jnp.isfinite(logp)))
    # log_softmax rows must (exp-)sum to ~1
    assert jnp.allclose(jnp.sum(jnp.exp(logp), axis=1), 1.0, atol=1e-4)
    print("KERNEL_OK")
</pallas_src>

<mosaic_0001>
module attributes {stable_mosaic.version = 11 : i64} {
  func.func @_fused_linear_kernel(%arg0: i32, %arg1: memref<8x16xbf16, #tpu.memory_space<vmem>>, %arg2: memref<16x128xbf16, #tpu.memory_space<vmem>>, %arg3: memref<1x128xf32, #tpu.memory_space<vmem>>, %arg4: memref<8x64xbf16, #tpu.memory_space<vmem>>, %arg5: memref<8x64xbf16, #tpu.memory_space<vmem>>) attributes {dimension_semantics = [#tpu.dimension_semantics<parallel>], iteration_bounds = array<i64: 1>, scalar_prefetch = 0 : i64, scratch_operands = 0 : i64, tpu.core_type = #tpu.core_type<tc>, window_params = [{transform_indices = @transform_0, window_bounds = array<i64: 8, 16>}, {pipeline_mode = #tpu.pipeline_mode<synchronous>, transform_indices = @transform_1, window_bounds = array<i64: 16, 128>}, {pipeline_mode = #tpu.pipeline_mode<synchronous>, transform_indices = @transform_2, window_bounds = array<i64: 1, 128>}, {transform_indices = @transform_3, window_bounds = array<i64: 8, 64>}, {transform_indices = @transform_4, window_bounds = array<i64: 8, 64>}]} {
    %c0 = arith.constant 0 : index
    %c0_0 = arith.constant 0 : index
    %0 = vector.load %arg1[%c0, %c0_0] : memref<8x16xbf16, #tpu.memory_space<vmem>>, vector<8x16xbf16>
    %c0_1 = arith.constant 0 : index
    %c0_2 = arith.constant 0 : index
    %1 = vector.load %arg2[%c0_1, %c0_2] : memref<16x128xbf16, #tpu.memory_space<vmem>>, vector<16x128xbf16>
    %cst = arith.constant dense<0.000000e+00> : vector<8x128xf32>
    %2 = tpu.matmul %0, %1, %cst {dimension_numbers = #tpu.dot_dimension_numbers<[1], [0], [0], [1], [0, 0, 1, 1], [], []>} : vector<8x16xbf16>, vector<16x128xbf16>, vector<8x128xf32> -> vector<8x128xf32>
    %c0_3 = arith.constant 0 : index
    %c0_4 = arith.constant 0 : index
    %3 = vector.load %arg3[%c0_3, %c0_4] : memref<1x128xf32, #tpu.memory_space<vmem>>, vector<1x128xf32>
    %4 = vector.broadcast %3 : vector<1x128xf32> to vector<8x128xf32>
    %5 = arith.addf %2, %4 : vector<8x128xf32>
    %6 = vector.extract_strided_slice %5 {offsets = [0, 0], sizes = [8, 64], strides = [1, 1]} : vector<8x128xf32> to vector<8x64xf32>
    %7 = arith.truncf %6 : vector<8x64xf32> to vector<8x64xbf16>
    %c0_5 = arith.constant 0 : index
    %c0_6 = arith.constant 0 : index
    %8 = vector.load %arg4[%c0_5, %c0_6] : memref<8x64xbf16, #tpu.memory_space<vmem>>, vector<8x64xbf16>
    tpu.vector_store %arg4[%c0_5, %c0_6], %7 {strides = array<i32>} : memref<8x64xbf16, #tpu.memory_space<vmem>>, vector<8x64xbf16>,
    %9 = vector.extract_strided_slice %5 {offsets = [0, 64], sizes = [8, 64], strides = [1, 1]} : vector<8x128xf32> to vector<8x64xf32>
    %10 = arith.truncf %9 : vector<8x64xf32> to vector<8x64xbf16>
    %c0_7 = arith.constant 0 : index
    %c0_8 = arith.constant 0 : index
    %11 = vector.load %arg5[%c0_7, %c0_8] : memref<8x64xbf16, #tpu.memory_space<vmem>>, vector<8x64xbf16>
    tpu.vector_store %arg5[%c0_7, %c0_8], %10 {strides = array<i32>} : memref<8x64xbf16, #tpu.memory_space<vmem>>, vector<8x64xbf16>,
    return
  }
  func.func @transform_0(%arg0: i32) -> (i32, i32) {
    %c0_i32 = arith.constant 0 : i32
    %c0_i32_0 = arith.constant 0 : i32
    return %arg0, %c0_i32 : i32, i32
  }
  func.func @transform_1(%arg0: i32) -> (i32, i32) {
    %c0_i32 = arith.constant 0 : i32
    %c0_i32_0 = arith.constant 0 : i32
    %c0_i32_1 = arith.constant 0 : i32
    return %c0_i32, %c0_i32_0 : i32, i32
  }
  func.func @transform_2(%arg0: i32) -> (i32, i32) {
    %c0_i32 = arith.constant 0 : i32
    %c0_i32_0 = arith.constant 0 : i32
    %c0_i32_1 = arith.constant 0 : i32
    return %c0_i32, %c0_i32_0 : i32, i32
  }
  func.func @transform_3(%arg0: i32) -> (i32, i32) {
    %c0_i32 = arith.constant 0 : i32
    %c0_i32_0 = arith.constant 0 : i32
    return %arg0, %c0_i32 : i32, i32
  }
  func.func @transform_4(%arg0: i32) -> (i32, i32) {
    %c0_i32 = arith.constant 0 : i32
    %c0_i32_0 = arith.constant 0 : i32
    return %arg0, %c0_i32 : i32, i32
  }
}

</mosaic_0001>

<llo_original>
// kernel: tpu_custom_call.1
$region0: #{tpu_custom_call.1}
  #allocation0 [shape = 'u32[]', space=smem, size = 0x4, offset = 0x4, fixed_abs, tag = 'smem constant byte address 0x4 - core index']
  #allocation1 [shape = 'u32[144,128]{1,0:T(1,128)}', space=vmem, size = 0x12000, scoped, tag = 'internal scratch']
  %s0 = inlined_call_operand.hbm [shape: bf16[8,16], index: 0, kind: input, shape index: {}]
  %s1 = inlined_call_operand.hbm [shape: bf16[16,128], index: 1, kind: input, shape index: {}]
  %s2 = inlined_call_operand.vmem [shape: f32[1,128], index: 2, kind: input, shape index: {}]
  %s3 = inlined_call_operand.hbm [shape: bf16[8,64], index: 3, kind: output, shape index: {0}]
  %s4 = inlined_call_operand.hbm [shape: bf16[8,64], index: 4, kind: output, shape index: {1}]
  %5 = xla_tuple %s3, %s4
  %s6 = sld [smem:[#allocation0]]
  $region38: #{tpu_custom_call.1} parent=0
    _
  %s8 = ssub.s32 1, %s6
  %s9 = scalar_select 0, %s8, %s6
  $region1: #{tpu_custom_call.1} parent=0
    #allocation2 [shape = 'u8[2048]{0}', space=vmem, size = 0x800, scoped, tag = 'input window, operand 0, single buffered']
    #allocation3 [shape = 's32[1]{0}', space=sflag, size = 0x4, scoped, tag = 'scoped memory for tpu_custom_call.1']
    #allocation4 [shape = 's32[1]{0}', space=sflag, size = 0x4, scoped, tag = 'scoped memory for tpu_custom_call.1']
    #allocation5 [shape = 'u8[4096]{0}', space=vmem, size = 0x1000, scoped, tag = 'input window, operand 1, single buffered']
    #allocation6 [shape = 's32[1]{0}', space=sflag, size = 0x4, scoped, tag = 'scoped memory for tpu_custom_call.1']
    #allocation7 [shape = 'u8[2048]{0}', space=vmem, size = 0x800, scoped, tag = 'output window, operand 0, single buffered']
    #allocation8 [shape = 'u8[2048]{0}', space=vmem, size = 0x800, scoped, tag = 'output window, operand 1, single buffered']
    #allocation9 [shape = 's32[1]{0}', space=sflag, size = 0x4, scoped, tag = 'scoped memory for tpu_custom_call.1']
    %10 = vsyncpa [#allocation3], 0
    %11 = vsyncpa [#allocation6], 0
    %12 = vsyncpa [#allocation4], 0
    %13 = vsyncpa [#allocation9], 0
    // Predicated region
    $region2: #{tpu_custom_call.1} parent=1 // pred_check
      _
    $region3: #{tpu_custom_call.1} parent=1 // pred_check_branch
      %15 = sbr.rel (0) target = $region5
    $region4: #{tpu_custom_call.1} parent=1 // pred_region
      %s17 = ssub.s32 64, 64
      %18 = vsyncadd [#allocation3], %s17
      %s20 = sshll.u32 [#allocation2], 4
      %s21 = int_to_ptr.vmem [resolvable:$true] %s20
      %23 = dma.hbm_to_vmem [thread:$0]  %s0, 64, %s21, [#allocation3]
    $region5: #{tpu_custom_call.1} parent=1 // pred_fallthru
      _
    // Predicated region
    $region6: #{tpu_custom_call.1} parent=1 // pred_check
      _
    $region7: #{tpu_custom_call.1} parent=1 // pred_check_branch
      %25 = sbr.rel (0) target = $region9
    $region8: #{tpu_custom_call.1} parent=1 // pred_region
      %s27 = ssub.s32 128, 128
      %28 = vsyncadd [#allocation6], %s27
      %s29 = sshll.u32 [#allocation5], 4
      %s30 = int_to_ptr.vmem [resolvable:$true] %s29
      %35 = dma.hbm_to_vmem [thread:$0]  %s1, 128, %s30, [#allocation6], 64, 64, 4
    $region9: #{tpu_custom_call.1} parent=1 // pred_fallthru
      _
    // Predicated region
    $region10: #{tpu_custom_call.1} parent=1 // pred_check
      _
    $region11: #{tpu_custom_call.1} parent=1 // pred_check_branch
      %37 = sbr.rel (0) target = $region13
    $region12: #{tpu_custom_call.1} parent=1 // pred_region
      _
    $region13: #{tpu_custom_call.1} parent=1 // pred_fallthru
      _
    // Predicated region
    $region14: #{tpu_custom_call.1} parent=1 // pred_check
      _
    $region15: #{tpu_custom_call.1} parent=1 // pred_check_branch
      %39 = sbr.rel (0) target = $region17
    $region16: #{tpu_custom_call.1} parent=1 // pred_region
      %40 = dma.done [#allocation3], 64
    $region17: #{tpu_custom_call.1} parent=1 // pred_fallthru
      _
    // Predicated region
    $region18: #{tpu_custom_call.1} parent=1 // pred_check
      _
    $region19: #{tpu_custom_call.1} parent=1 // pred_check_branch
      %42 = sbr.rel (0) target = $region21
    $region20: #{tpu_custom_call.1} parent=1 // pred_region
      %43 = dma.done [#allocation6], 128
    $region21: #{tpu_custom_call.1} parent=1 // pred_fallthru
      _
    %v45 = vld [vmem:[#allocation2] sm:$0xf]
    %v46 = vld [vmem:[#allocation5] sm:$0xf]
    %v47 = vld [vmem:[#allocation5 + $0x4] sm:$0xf]
    %v48 = vld [vmem:[%s2] sm:$0x1]
    %v50 = vlaneseq
    %v51 = vshrl.u32 %v50, 7
    %v52 = vsub.s32 0, %v51
    %v53 = vrot.slane %v48, %v52
    %v57 = vunpack.c.l.b16 %v46
    %v58 = vunpack.c.l.b16 %v47
    %v59 = vpack.c.b16 %v58, %v57
    %vm61 = vcmask 130048
    %v63 = vsel %vm61, %v45, 0
    %65 = vmatprep.subr.bf16.mxu0 0
    %66 = vmatpush1.bf16.msra.mxu0 %v59
    %67 = vmatprep.subr.bf16.mxu0 0
    %68 = vmatpush1.bf16.msra.mxu0 0
    %69 = vmatprep.subr.bf16.mxu0 0
    %70 = vmatpush1.bf16.msra.mxu0 0
    %71 = vmatprep.subr.bf16.mxu0 0
    %72 = vmatpush1.bf16.msra.mxu0 0
    %73 = vmatprep.subr.bf16.mxu0 0
    %74 = vmatpush1.bf16.msra.mxu0 0
    %75 = vmatprep.subr.bf16.mxu0 0
    %76 = vmatpush1.bf16.msra.mxu0 0
    %77 = vmatprep.subr.bf16.mxu0 0
    %78 = vmatpush1.bf16.msra.mxu0 0
    %79 = vmatprep.subr.bf16.mxu0 0
    %80 = vmatpush1.bf16.msra.mxu0 0
    %81 = vmatprep.subr.bf16.mxu0 0
    %82 = vmatpush1.bf16.msra.mxu0 0
    %83 = vmatprep.subr.bf16.mxu0 0
    %84 = vmatpush1.bf16.msra.mxu0 0
    %85 = vmatprep.subr.bf16.mxu0 0
    %86 = vmatpush1.bf16.msra.mxu0 0
    %87 = vmatprep.subr.bf16.mxu0 0
    %88 = vmatpush1.bf16.msra.mxu0 0
    %89 = vmatprep.subr.bf16.mxu0 0
    %90 = vmatpush1.bf16.msra.mxu0 0
    %91 = vmatprep.subr.bf16.mxu0 0
    %92 = vmatpush1.bf16.msra.mxu0 0
    %93 = vmatprep.subr.bf16.mxu0 0
    %94 = vmatpush1.bf16.msra.mxu0 0
    %95 = vmatprep.subr.bf16.mxu0 0
    %96 = vmatpush1.bf16.msra.mxu0 0
    %97 = vmatprep.mubr.bf16.mxu0 0
    %98 = vmatmul.mubr.bf16.gmra.mrb[0].mxu0 %v63
    %v99 = vpop.f32.mrb[0].mxu0
    %v100 = vadd.f32 %v53, %v99
    %v101 = vpop.f32.mrb[0].mxu0
    %v102 = vpop.f32.mrb[0].mxu0
    %v103 = vpop.f32.mrb[0].mxu0
    %104 = vdwg.mxu0
    %v105 = vpack.c.bf16 %v100, %v100
    %vm106 = vcmask 519168
    %107 = vst.msk [vmem:[#allocation7] sm:$0xf] %vm106, %v105
    %v109 = vunpack.c.l.b16 %v105
    %v110 = vpack.c.b16 %v109, %v109
    %111 = vrot.lane.b32.xlu0 %v110, 64
    %v112 = vpop.permute.xlu0 %111
    %114 = vst.msk [vmem:[#allocation8] sm:$0xf] %vm106, %v112
    // Predicated region
    $region22: #{tpu_custom_call.1} parent=1 // pred_check
      _
    $region23: #{tpu_custom_call.1} parent=1 // pred_check_branch
      %116 = sbr.rel (0) target = $region25
    $region24: #{tpu_custom_call.1} parent=1 // pred_region
      %s118 = ssub.s32 64, 64
      %119 = vsyncadd [#allocation4], %s118
      %s121 = sshll.u32 [#allocation7], 4
      %s122 = int_to_ptr.vmem [resolvable:$true] %s121
      %124 = dma.vmem_to_hbm [thread:$0]  %s122, 64, %s3, [#allocation4]
    $region25: #{tpu_custom_call.1} parent=1 // pred_fallthru
      _
    // Predicated region
    $region26: #{tpu_custom_call.1} parent=1 // pred_check
      _
    $region27: #{tpu_custom_call.1} parent=1 // pred_check_branch
      %126 = sbr.rel (0) target = $region29
    $region28: #{tpu_custom_call.1} parent=1 // pred_region
      %s128 = ssub.s32 64, 64
      %129 = vsyncadd [#allocation9], %s128
      %s131 = sshll.u32 [#allocation8], 4
      %s132 = int_to_ptr.vmem [resolvable:$true] %s131
      %134 = dma.vmem_to_hbm [thread:$0]  %s132, 64, %s4, [#allocation9]
    $region29: #{tpu_custom_call.1} parent=1 // pred_fallthru
      _
    // Predicated region
    $region30: #{tpu_custom_call.1} parent=1 // pred_check
      _
    $region31: #{tpu_custom_call.1} parent=1 // pred_check_branch
      %136 = sbr.rel (0) target = $region33
    $region32: #{tpu_custom_call.1} parent=1 // pred_region
      %137 = dma.done [#allocation4], 64
    $region33: #{tpu_custom_call.1} parent=1 // pred_fallthru
      _
    // Predicated region
    $region34: #{tpu_custom_call.1} parent=1 // pred_check
      _
    $region35: #{tpu_custom_call.1} parent=1 // pred_check_branch
      %139 = sbr.rel (0) target = $region37
    $region36: #{tpu_custom_call.1} parent=1 // pred_region
      %140 = dma.done [#allocation9], 64
    $region37: #{tpu_custom_call.1} parent=1 // pred_fallthru
      _
    %141 = vsyncpa [#allocation3], 1
    %142 = vsyncpa [#allocation6], 1
    %143 = vsyncpa [#allocation4], 1
    %144 = vsyncpa [#allocation9], 1

</llo_original>
